<compile_context>
chip_gen: v7x
topology: tpu7x:2x2x1
jax: 0.10.0
libtpu: 0.0.40
codegen_flags: <defaults>
</compile_context>

<pallas_src>
import jax
import jax.numpy as jnp
from jax.experimental import pallas as pl
from jax.experimental.pallas import tpu as pltpu


def _concat_noise_kernel(x_ref, z_ref, out_ref):
    # x_ref:   (Bt, C,  T)  block of the input
    # z_ref:   (Bt, C,  T)  block of pre-sampled uniform noise in [-1, 1)
    # out_ref: (Bt, 2C, T)  concatenation along the channel axis
    C = x_ref.shape[1]
    out_ref[:, :C, :] = x_ref[...]
    out_ref[:, C:, :] = z_ref[...]


def _pick_tiles(N, C, F, itemsize, budget_bytes=8 << 20):
    """Choose (batch_tile, feature_tile) for the grid.

    Feature tile T is a multiple of 128 dividing F (or the full F when F is
    not 128-aligned); batch tile Bt packs small images together.  Both are
    capped so the double-buffered (x + noise + out) block footprint stays
    within `budget_bytes` on every TPU generation.
    """

    def footprint(bt, t):
        # x block + noise block + out block, double buffered.
        return 2 * bt * (4 * C * t) * itemsize

    if F % 128 == 0:
        T = 128
        max_t = min(F, 4096)
        for t in range(128, max_t + 1, 128):
            if F % t == 0 and footprint(1, t) <= budget_bytes and t >= T:
                T = t
    else:
        # Full extent is always a legal BlockSpec block dim.
        T = F

    Bt = 1
    for cand in range(N, 0, -1):
        if N % cand == 0 and footprint(cand, T) <= budget_bytes:
            Bt = cand
            break
    return Bt, T


def concat_noise(x, key):
    """x: (N, C, H, W) -> (N, 2C, H, W); last C channels are U[-1, 1) noise."""
    N, C, H, W = x.shape
    F = H * W

    # Matches torch Uniform(-1, 1).sample(x.shape): values in [-1, 1).
    noise = jax.random.uniform(
        key, (N, C, F), dtype=x.dtype, minval=-1.0, maxval=1.0
    )
    x_flat = x.reshape(N, C, F)  # lane-dense last axis for the kernel

    Bt, T = _pick_tiles(N, C, F, jnp.dtype(x.dtype).itemsize)

    out_flat = pl.pallas_call(
        _concat_noise_kernel,
        out_shape=jax.ShapeDtypeStruct((N, 2 * C, F), x.dtype),
        grid=(N // Bt, F // T),
        in_specs=[
            pl.BlockSpec((Bt, C, T), lambda b, f: (b, 0, f)),
            pl.BlockSpec((Bt, C, T), lambda b, f: (b, 0, f)),
        ],
        out_specs=pl.BlockSpec((Bt, 2 * C, T), lambda b, f: (b, 0, f)),
        compiler_params=pltpu.CompilerParams(
            # Grid steps are fully independent -> shard across v7x's 2 TCs.
            dimension_semantics=("parallel", "parallel"),
        ),
    )(x_flat, noise)

    return out_flat.reshape(N, 2 * C, H, W)


if __name__ == "__main__":
    key = jax.random.PRNGKey(0)
    k_x, k_noise = jax.random.split(key)

    N, C, H, W = 2, 4, 16, 16
    x = jax.random.normal(k_x, (N, C, H, W), dtype=jnp.float32)

    out = concat_noise(x, k_noise)
    out = jax.block_until_ready(out)

    assert out.shape == (N, 2 * C, H, W), out.shape
    assert out.dtype == x.dtype

    # First C channels must be exactly x (pure copy through the kernel).
    assert jnp.array_equal(out[:, :C], x)

    # Last C channels are uniform noise in [-1, 1).
    noise = out[:, C:]
    assert bool(jnp.all(noise >= -1.0)) and bool(jnp.all(noise < 1.0))
    # Sanity: noise is not constant / degenerate (std of U[-1,1) ~ 0.577).
    assert float(jnp.std(noise)) > 0.1

    print("KERNEL_OK")
</pallas_src>

<mosaic_0001>
module attributes {stable_mosaic.version = 11 : i64} {
  func.func @_concat_noise_kernel(%arg0: i32, %arg1: i32, %arg2: memref<2x4x256xf32, #tpu.memory_space<vmem>>, %arg3: memref<2x4x256xf32, #tpu.memory_space<vmem>>, %arg4: memref<2x8x256xf32, #tpu.memory_space<vmem>>) attributes {dimension_semantics = [#tpu.dimension_semantics<parallel>, #tpu.dimension_semantics<parallel>], iteration_bounds = array<i64: 1, 1>, scalar_prefetch = 0 : i64, scratch_operands = 0 : i64, tpu.core_type = #tpu.core_type<tc>, window_params = [{transform_indices = @transform_0, window_bounds = array<i64: 2, 4, 256>}, {transform_indices = @transform_1, window_bounds = array<i64: 2, 4, 256>}, {transform_indices = @transform_2, window_bounds = array<i64: 2, 8, 256>}]} {
    %c0 = arith.constant 0 : index
    %c0_0 = arith.constant 0 : index
    %c0_1 = arith.constant 0 : index
    %0 = vector.load %arg2[%c0, %c0_0, %c0_1] : memref<2x4x256xf32, #tpu.memory_space<vmem>>, vector<2x4x256xf32>
    %c0_2 = arith.constant 0 : index
    %c0_3 = arith.constant 0 : index
    %c0_4 = arith.constant 0 : index
    %1 = vector.load %arg4[%c0_2, %c0_3, %c0_4] : memref<2x8x256xf32, #tpu.memory_space<vmem>>, vector<2x4x256xf32>
    tpu.vector_store %arg4[%c0_2, %c0_3, %c0_4], %0 {strides = array<i32>} : memref<2x8x256xf32, #tpu.memory_space<vmem>>, vector<2x4x256xf32>,
    %c0_5 = arith.constant 0 : index
    %c0_6 = arith.constant 0 : index
    %c0_7 = arith.constant 0 : index
    %2 = vector.load %arg3[%c0_5, %c0_6, %c0_7] : memref<2x4x256xf32, #tpu.memory_space<vmem>>, vector<2x4x256xf32>
    %c0_8 = arith.constant 0 : index
    %c4 = arith.constant 4 : index
    %c0_9 = arith.constant 0 : index
    %3 = vector.load %arg4[%c0_8, %c4, %c0_9] : memref<2x8x256xf32, #tpu.memory_space<vmem>>, vector<2x4x256xf32>
    tpu.vector_store %arg4[%c0_8, %c4, %c0_9], %2 {strides = array<i32>} : memref<2x8x256xf32, #tpu.memory_space<vmem>>, vector<2x4x256xf32>,
    return
  }
  func.func @transform_0(%arg0: i32, %arg1: i32) -> (i32, i32, i32) {
    %c0_i32 = arith.constant 0 : i32
    %c0_i32_0 = arith.constant 0 : i32
    return %arg0, %c0_i32, %arg1 : i32, i32, i32
  }
  func.func @transform_1(%arg0: i32, %arg1: i32) -> (i32, i32, i32) {
    %c0_i32 = arith.constant 0 : i32
    %c0_i32_0 = arith.constant 0 : i32
    return %arg0, %c0_i32, %arg1 : i32, i32, i32
  }
  func.func @transform_2(%arg0: i32, %arg1: i32) -> (i32, i32, i32) {
    %c0_i32 = arith.constant 0 : i32
    %c0_i32_0 = arith.constant 0 : i32
    return %arg0, %c0_i32, %arg1 : i32, i32, i32
  }
}

</mosaic_0001>

<llo_original>
// kernel: tpu_custom_call.1
$region0: #{tpu_custom_call.1}
  #allocation0 [shape = 'u32[]', space=smem, size = 0x4, offset = 0x4, fixed_abs, tag = 'smem constant byte address 0x4 - core index']
  #allocation1 [shape = 'u32[144,128]{1,0:T(1,128)}', space=vmem, size = 0x12000, scoped, tag = 'internal scratch']
  %s0 = inlined_call_operand.hbm [shape: f32[2,4,256], index: 0, kind: input, shape index: {}]
  %s1 = inlined_call_operand.hbm [shape: f32[2,4,256], index: 1, kind: input, shape index: {}]
  %s2 = inlined_call_operand.hbm [shape: f32[2,8,256], index: 2, kind: output, shape index: {}]
  %s3 = sld [smem:[#allocation0]]
  $region26: #{tpu_custom_call.1} parent=0
    _
  %s5 = ssub.s32 1, %s3
  %s6 = scalar_select 0, %s5, %s3
  $region1: #{tpu_custom_call.1} parent=0
    #allocation2 [shape = 'u8[8192]{0}', space=vmem, size = 0x2000, scoped, tag = 'input window, operand 0, single buffered']
    #allocation3 [shape = 's32[1]{0}', space=sflag, size = 0x4, scoped, tag = 'scoped memory for tpu_custom_call.1']
    #allocation4 [shape = 's32[1]{0}', space=sflag, size = 0x4, scoped, tag = 'scoped memory for tpu_custom_call.1']
    #allocation5 [shape = 'u8[8192]{0}', space=vmem, size = 0x2000, scoped, tag = 'input window, operand 1, single buffered']
    #allocation6 [shape = 's32[1]{0}', space=sflag, size = 0x4, scoped, tag = 'scoped memory for tpu_custom_call.1']
    #allocation7 [shape = 'u8[16384]{0}', space=vmem, size = 0x4000, scoped, tag = 'output window, operand 0, single buffered']
    %7 = vsyncpa [#allocation3], 0
    %8 = vsyncpa [#allocation6], 0
    %9 = vsyncpa [#allocation4], 0
    // Predicated region
    $region2: #{tpu_custom_call.1} parent=1 // pred_check
      _
    $region3: #{tpu_custom_call.1} parent=1 // pred_check_branch
      %11 = sbr.rel (0) target = $region5
    $region4: #{tpu_custom_call.1} parent=1 // pred_region
      %s13 = ssub.s32 256, 256
      %14 = vsyncadd [#allocation3], %s13
      %s15 = sshll.u32 [#allocation2], 4
      %s16 = int_to_ptr.vmem [resolvable:$true] %s15
      %21 = dma.hbm_to_vmem [thread:$0]  %s0, 256, %s16, [#allocation3], 128, 128, 8
    $region5: #{tpu_custom_call.1} parent=1 // pred_fallthru
      _
    // Predicated region
    $region6: #{tpu_custom_call.1} parent=1 // pred_check
      _
    $region7: #{tpu_custom_call.1} parent=1 // pred_check_branch
      %23 = sbr.rel (0) target = $region9
    $region8: #{tpu_custom_call.1} parent=1 // pred_region
      %s25 = ssub.s32 256, 256
      %26 = vsyncadd [#allocation6], %s25
      %s27 = sshll.u32 [#allocation5], 4
      %s28 = int_to_ptr.vmem [resolvable:$true] %s27
      %33 = dma.hbm_to_vmem [thread:$0]  %s1, 256, %s28, [#allocation6], 128, 128, 8
    $region9: #{tpu_custom_call.1} parent=1 // pred_fallthru
      _
    // Predicated region
    $region10: #{tpu_custom_call.1} parent=1 // pred_check
      _
    $region11: #{tpu_custom_call.1} parent=1 // pred_check_branch
      %35 = sbr.rel (0) target = $region13
    $region12: #{tpu_custom_call.1} parent=1 // pred_region
      %36 = dma.done [#allocation3], 256
    $region13: #{tpu_custom_call.1} parent=1 // pred_fallthru
      _
    // Predicated region
    $region14: #{tpu_custom_call.1} parent=1 // pred_check
      _
    $region15: #{tpu_custom_call.1} parent=1 // pred_check_branch
      %38 = sbr.rel (0) target = $region17
    $region16: #{tpu_custom_call.1} parent=1 // pred_region
      %39 = dma.done [#allocation6], 256
    $region17: #{tpu_custom_call.1} parent=1 // pred_fallthru
      _
    %v40 = vld [vmem:[#allocation2] sm:$0xff]
    %v41 = vld [vmem:[#allocation2 + $0x8] sm:$0xff]
    %v44 = vcombine.high %v40, %v40
    %v45 = vcombine.high %v41, %v41
    %48 = vst [vmem:[#allocation7] sm:$0xf] %v40
    %49 = vst [vmem:[#allocation7 + $0x8] sm:$0xf] %v44
    %50 = vst [vmem:[#allocation7 + $0x10] sm:$0xf] %v41
    %51 = vst [vmem:[#allocation7 + $0x18] sm:$0xf] %v45
    %v52 = vld [vmem:[#allocation5] sm:$0xff]
    %v53 = vld [vmem:[#allocation5 + $0x8] sm:$0xff]
    %v56 = vcombine.low %v52, %v52
    %v57 = vcombine.low %v53, %v53
    %60 = vst [vmem:[#allocation7] sm:$0xf0] %v56
    %61 = vst [vmem:[#allocation7 + $0x8] sm:$0xf0] %v52
    %62 = vst [vmem:[#allocation7 + $0x10] sm:$0xf0] %v57
    %63 = vst [vmem:[#allocation7 + $0x18] sm:$0xf0] %v53
    // Predicated region
    $region18: #{tpu_custom_call.1} parent=1 // pred_check
      _
    $region19: #{tpu_custom_call.1} parent=1 // pred_check_branch
      %65 = sbr.rel (0) target = $region21
    $region20: #{tpu_custom_call.1} parent=1 // pred_region
      %s67 = ssub.s32 512, 512
      %68 = vsyncadd [#allocation4], %s67
      %s69 = sshll.u32 [#allocation7], 4
      %s70 = int_to_ptr.vmem [resolvable:$true] %s69
      %75 = dma.vmem_to_hbm [thread:$0]  %s70, 512, %s2, [#allocation4], 256, 256, 16
    $region21: #{tpu_custom_call.1} parent=1 // pred_fallthru
      _
    // Predicated region
    $region22: #{tpu_custom_call.1} parent=1 // pred_check
      _
    $region23: #{tpu_custom_call.1} parent=1 // pred_check_branch
      %77 = sbr.rel (0) target = $region25
    $region24: #{tpu_custom_call.1} parent=1 // pred_region
      %78 = dma.done [#allocation4], 512
    $region25: #{tpu_custom_call.1} parent=1 // pred_fallthru
      _
    %79 = vsyncpa [#allocation3], 1
    %80 = vsyncpa [#allocation6], 1
    %81 = vsyncpa [#allocation4], 1

</llo_original>
